<compile_context>
chip_gen: v6e
topology: v6e:2x2x1
jax: 0.10.0
libtpu: 0.0.40
codegen_flags: <defaults>
</compile_context>

<pallas_src>
import jax
import jax.numpy as jnp
from jax.experimental import pallas as pl
from jax.experimental.pallas import tpu as pltpu


def _round_up(x: int, m: int) -> int:
    return ((x + m - 1) // m) * m


def _reward_kernel(s_ref, a_ref, w1s_ref, w1a_ref, b1_ref,
                   w2_ref, b2_ref, w3_ref, b3_ref, o_ref):
    # Layer 1 (batch on lanes): (H,S)@(S,tm) + (H,A)@(A,tm) + b1 -> (H,tm), ReLU.
    h = jnp.dot(w1s_ref[...], s_ref[...], preferred_element_type=jnp.float32)
    h = h + jnp.dot(w1a_ref[...], a_ref[...], preferred_element_type=jnp.float32)
    h = jnp.maximum(h + b1_ref[...], 0.0)
    # Layer 2: (H,H)@(H,tm) + b2 -> (H,tm), ReLU.
    h = jnp.dot(w2_ref[...], h, preferred_element_type=jnp.float32) + b2_ref[...]
    h = jnp.maximum(h, 0.0)
    # Head (out_features=1): broadcast-multiply + sublane reduction -> lane-dense
    # (1, tm) result; avoids an M=1/N=1 MXU dot. b3 is a scalar read from SMEM.
    r = jnp.sum(h * w3_ref[...], axis=0, keepdims=True) + b3_ref[0]
    o_ref[...] = r.astype(o_ref.dtype)


def _reference_forward(state, action, params):
    """Pure-JAX reference matching the PyTorch module exactly."""
    w1, b1, w2, b2, w3, b3 = params
    sa = jnp.concatenate([state, action], axis=1).astype(jnp.float32)
    h = jnp.maximum(sa @ w1 + b1, 0.0)
    h = jnp.maximum(h @ w2 + b2, 0.0)
    return h @ w3 + b3


def reward_network_forward(state, action, params, *,
                           block_batch=8192, min_pallas_batch=512):
    """state: (B, state_dim), action: (B, action_dim) -> (B, 1)."""
    w1, b1, w2, b2, w3, b3 = params
    B, S = state.shape
    A = action.shape[1]
    H = w1.shape[1]

    # Tiny batches: pallas_call dispatch overhead dominates -> plain XLA.
    if B < max(min_pallas_batch, 128):
        return _reference_forward(state, action, params)

    # Batch-on-lanes layout: transpose the activation streams once in the
    # wrapper; all weight reshapes/transposes are tiny (free).
    state_t = state.astype(jnp.float32).T          # (S, B)
    action_t = action.astype(jnp.float32).T        # (A, B)
    w1_f = w1.astype(jnp.float32)
    w1s_t = w1_f[:S].T                             # (H, S)   torch.cat folded away
    w1a_t = w1_f[S:].T                             # (H, A)
    b1_c = b1.reshape(H, 1).astype(jnp.float32)    # lane-broadcast column
    w2_t = w2.astype(jnp.float32).T                # (H, H)
    b2_c = b2.reshape(H, 1).astype(jnp.float32)
    w3_c = w3.reshape(H, 1).astype(jnp.float32)
    b3_s = b3.reshape(1).astype(jnp.float32)       # 1-D scalar for SMEM

    # Batch tile on the lane axis: multiple of 128. Pallas masks the partial
    # edge block, so there is no jnp.pad pass over the activations.
    tm = max(128, min(_round_up(block_batch, 128), _round_up(B, 128)))
    grid = (pl.cdiv(B, tm),)

    out = pl.pallas_call(
        _reward_kernel,
        out_shape=jax.ShapeDtypeStruct((1, B), jnp.float32),
        grid_spec=pltpu.PrefetchScalarGridSpec(
            num_scalar_prefetch=0,
            grid=grid,
            in_specs=[
                # Activations: lane-dense (dim, tm) blocks, pipelined over batch.
                pl.BlockSpec((S, tm), lambda i: (0, i)),
                pl.BlockSpec((A, tm), lambda i: (0, i)),
                # Weights/biases: constant index_map -> resident in VMEM.
                pl.BlockSpec((H, S), lambda i: (0, 0)),
                pl.BlockSpec((H, A), lambda i: (0, 0)),
                pl.BlockSpec((H, 1), lambda i: (0, 0)),
                pl.BlockSpec((H, H), lambda i: (0, 0)),
                pl.BlockSpec((H, 1), lambda i: (0, 0)),
                pl.BlockSpec((H, 1), lambda i: (0, 0)),
                # Head bias: scalar in SMEM (no padded VMEM tile / DMA stream).
                pl.BlockSpec(memory_space=pltpu.MemorySpace.SMEM),
            ],
            # Lane-dense output: full-width vst, no masked partial stores.
            out_specs=pl.BlockSpec((1, tm), lambda i: (0, i)),
        ),
        compiler_params=pltpu.CompilerParams(
            dimension_semantics=("parallel",),  # shard batch steps across v7x TCs
        ),
    )(state_t, action_t, w1s_t, w1a_t, b1_c, w2_t, b2_c, w3_c, b3_s)

    # (1, B) and (B, 1) have identical row-major data order -> free reshape.
    return out.reshape(B, 1)


def init_params(key, state_dim, action_dim, hidden_dim):
    """Deterministic init mimicking nn.Linear's uniform(-1/sqrt(fan_in), +).

    Weights stored as (in_features, out_features), biases 1-D.
    """
    ks = jax.random.split(key, 6)
    in1 = state_dim + action_dim

    def u(k, shape, fan_in):
        bound = 1.0 / jnp.sqrt(jnp.float32(fan_in))
        return jax.random.uniform(k, shape, jnp.float32, -bound, bound)

    w1 = u(ks[0], (in1, hidden_dim), in1)
    b1 = u(ks[1], (hidden_dim,), in1)
    w2 = u(ks[2], (hidden_dim, hidden_dim), hidden_dim)
    b2 = u(ks[3], (hidden_dim,), hidden_dim)
    w3 = u(ks[4], (hidden_dim, 1), hidden_dim)
    b3 = u(ks[5], (1,), hidden_dim)
    return (w1, b1, w2, b2, w3, b3)


if __name__ == "__main__":
    state_dim, action_dim, hidden_dim = 6, 2, 32

    key = jax.random.PRNGKey(0)
    k_p, k_data = jax.random.split(key)
    params = init_params(k_p, state_dim, action_dim, hidden_dim)

    # Case 1: Pallas path, several grid steps (B divisible by the tile).
    # Case 2: Pallas path, masked edge block (B not a multiple of 128).
    # Case 3: tiny deployed batch -> plain-XLA fallback (pallas skipped by design).
    cases = (
        (512, 128, 0),
        (300, 128, 0),
        (8, 8192, 512),
    )
    for batch, bb, minb in cases:
        k_s, k_a, k_data = jax.random.split(k_data, 3)
        state = jax.random.normal(k_s, (batch, state_dim), jnp.float32)
        action = jax.random.normal(k_a, (batch, action_dim), jnp.float32)

        out = reward_network_forward(state, action, params,
                                     block_batch=bb, min_pallas_batch=minb)
        out = jax.block_until_ready(out)

        ref = _reference_forward(state, action, params)
        assert out.shape == (batch, 1), (out.shape, batch)
        assert jnp.allclose(out, ref, atol=1e-5, rtol=1e-5), (batch, out, ref)

    print("KERNEL_OK")
</pallas_src>

<mosaic_0001>
module attributes {stable_mosaic.version = 11 : i64} {
  func.func @_reward_kernel(%arg0: i32, %arg1: memref<6x128xf32, #tpu.memory_space<vmem>>, %arg2: memref<2x128xf32, #tpu.memory_space<vmem>>, %arg3: memref<32x6xf32, #tpu.memory_space<vmem>>, %arg4: memref<32x2xf32, #tpu.memory_space<vmem>>, %arg5: memref<32x1xf32, #tpu.memory_space<vmem>>, %arg6: memref<32x32xf32, #tpu.memory_space<vmem>>, %arg7: memref<32x1xf32, #tpu.memory_space<vmem>>, %arg8: memref<32x1xf32, #tpu.memory_space<vmem>>, %arg9: memref<1xf32, #tpu.memory_space<smem>>, %arg10: memref<1x128xf32, #tpu.memory_space<vmem>>) attributes {dimension_semantics = [#tpu.dimension_semantics<parallel>], iteration_bounds = array<i64: 4>, scalar_prefetch = 0 : i64, scratch_operands = 0 : i64, tpu.core_type = #tpu.core_type<tc>, window_params = [{transform_indices = @transform_0, window_bounds = array<i64: 6, 128>}, {transform_indices = @transform_1, window_bounds = array<i64: 2, 128>}, {pipeline_mode = #tpu.pipeline_mode<synchronous>, transform_indices = @transform_2, window_bounds = array<i64: 32, 6>}, {pipeline_mode = #tpu.pipeline_mode<synchronous>, transform_indices = @transform_3, window_bounds = array<i64: 32, 2>}, {pipeline_mode = #tpu.pipeline_mode<synchronous>, transform_indices = @transform_4, window_bounds = array<i64: 32, 1>}, {pipeline_mode = #tpu.pipeline_mode<synchronous>, transform_indices = @transform_5, window_bounds = array<i64: 32, 32>}, {pipeline_mode = #tpu.pipeline_mode<synchronous>, transform_indices = @transform_6, window_bounds = array<i64: 32, 1>}, {pipeline_mode = #tpu.pipeline_mode<synchronous>, transform_indices = @transform_7, window_bounds = array<i64: 32, 1>}, {transform_indices = @transform_8, window_bounds = array<i64: 1>}, {transform_indices = @transform_9, window_bounds = array<i64: 1, 128>}]} {
    %c0 = arith.constant 0 : index
    %c0_0 = arith.constant 0 : index
    %0 = vector.load %arg3[%c0, %c0_0] : memref<32x6xf32, #tpu.memory_space<vmem>>, vector<32x6xf32>
    %c0_1 = arith.constant 0 : index
    %c0_2 = arith.constant 0 : index
    %1 = vector.load %arg1[%c0_1, %c0_2] : memref<6x128xf32, #tpu.memory_space<vmem>>, vector<6x128xf32>
    %cst = arith.constant dense<0.000000e+00> : vector<32x128xf32>
    %2 = tpu.matmul %0, %1, %cst {dimension_numbers = #tpu.dot_dimension_numbers<[1], [0], [0], [1], [0, 0, 1, 1], [], []>} : vector<32x6xf32>, vector<6x128xf32>, vector<32x128xf32> -> vector<32x128xf32>
    %c0_3 = arith.constant 0 : index
    %c0_4 = arith.constant 0 : index
    %3 = vector.load %arg4[%c0_3, %c0_4] : memref<32x2xf32, #tpu.memory_space<vmem>>, vector<32x2xf32>
    %c0_5 = arith.constant 0 : index
    %c0_6 = arith.constant 0 : index
    %4 = vector.load %arg2[%c0_5, %c0_6] : memref<2x128xf32, #tpu.memory_space<vmem>>, vector<2x128xf32>
    %cst_7 = arith.constant dense<0.000000e+00> : vector<32x128xf32>
    %5 = tpu.matmul %3, %4, %cst_7 {dimension_numbers = #tpu.dot_dimension_numbers<[1], [0], [0], [1], [0, 0, 1, 1], [], []>} : vector<32x2xf32>, vector<2x128xf32>, vector<32x128xf32> -> vector<32x128xf32>
    %6 = arith.addf %2, %5 : vector<32x128xf32>
    %c0_8 = arith.constant 0 : index
    %c0_9 = arith.constant 0 : index
    %7 = vector.load %arg5[%c0_8, %c0_9] : memref<32x1xf32, #tpu.memory_space<vmem>>, vector<32x1xf32>
    %8 = vector.broadcast %7 : vector<32x1xf32> to vector<32x128xf32>
    %9 = arith.addf %6, %8 : vector<32x128xf32>
    %cst_10 = arith.constant 0.000000e+00 : f32
    %10 = vector.broadcast %cst_10 : f32 to vector<32x128xf32>
    %11 = arith.maximumf %9, %10 : vector<32x128xf32>
    %c0_11 = arith.constant 0 : index
    %c0_12 = arith.constant 0 : index
    %12 = vector.load %arg6[%c0_11, %c0_12] : memref<32x32xf32, #tpu.memory_space<vmem>>, vector<32x32xf32>
    %cst_13 = arith.constant dense<0.000000e+00> : vector<32x128xf32>
    %13 = tpu.matmul %12, %11, %cst_13 {dimension_numbers = #tpu.dot_dimension_numbers<[1], [0], [0], [1], [0, 0, 1, 1], [], []>} : vector<32x32xf32>, vector<32x128xf32>, vector<32x128xf32> -> vector<32x128xf32>
    %c0_14 = arith.constant 0 : index
    %c0_15 = arith.constant 0 : index
    %14 = vector.load %arg7[%c0_14, %c0_15] : memref<32x1xf32, #tpu.memory_space<vmem>>, vector<32x1xf32>
    %15 = vector.broadcast %14 : vector<32x1xf32> to vector<32x128xf32>
    %16 = arith.addf %13, %15 : vector<32x128xf32>
    %cst_16 = arith.constant 0.000000e+00 : f32
    %17 = vector.broadcast %cst_16 : f32 to vector<32x128xf32>
    %18 = arith.maximumf %16, %17 : vector<32x128xf32>
    %c0_17 = arith.constant 0 : index
    %c0_18 = arith.constant 0 : index
    %19 = vector.load %arg8[%c0_17, %c0_18] : memref<32x1xf32, #tpu.memory_space<vmem>>, vector<32x1xf32>
    %20 = vector.broadcast %19 : vector<32x1xf32> to vector<32x128xf32>
    %21 = arith.mulf %18, %20 : vector<32x128xf32>
    %cst_19 = arith.constant dense<0.000000e+00> : vector<128xf32>
    %22 = vector.multi_reduction <add>, %21, %cst_19 [0] : vector<32x128xf32> to vector<128xf32>
    %23 = vector.shape_cast %22 : vector<128xf32> to vector<1x128xf32>
    %c0_20 = arith.constant 0 : index
    %24 = memref.load %arg9[%c0_20] : memref<1xf32, #tpu.memory_space<smem>>
    %25 = vector.broadcast %24 : f32 to vector<1x128xf32>
    %26 = arith.addf %23, %25 : vector<1x128xf32>
    %c0_21 = arith.constant 0 : index
    %c0_22 = arith.constant 0 : index
    %27 = vector.load %arg10[%c0_21, %c0_22] : memref<1x128xf32, #tpu.memory_space<vmem>>, vector<1x128xf32>
    tpu.vector_store %arg10[%c0_21, %c0_22], %26 {strides = array<i32>} : memref<1x128xf32, #tpu.memory_space<vmem>>, vector<1x128xf32>,
    return
  }
  func.func @transform_0(%arg0: i32) -> (i32, i32) {
    %c0_i32 = arith.constant 0 : i32
    %c0_i32_0 = arith.constant 0 : i32
    return %c0_i32, %arg0 : i32, i32
  }
  func.func @transform_1(%arg0: i32) -> (i32, i32) {
    %c0_i32 = arith.constant 0 : i32
    %c0_i32_0 = arith.constant 0 : i32
    return %c0_i32, %arg0 : i32, i32
  }
  func.func @transform_2(%arg0: i32) -> (i32, i32) {
    %c0_i32 = arith.constant 0 : i32
    %c0_i32_0 = arith.constant 0 : i32
    %c0_i32_1 = arith.constant 0 : i32
    return %c0_i32, %c0_i32_0 : i32, i32
  }
  func.func @transform_3(%arg0: i32) -> (i32, i32) {
    %c0_i32 = arith.constant 0 : i32
    %c0_i32_0 = arith.constant 0 : i32
    %c0_i32_1 = arith.constant 0 : i32
    return %c0_i32, %c0_i32_0 : i32, i32
  }
  func.func @transform_4(%arg0: i32) -> (i32, i32) {
    %c0_i32 = arith.constant 0 : i32
    %c0_i32_0 = arith.constant 0 : i32
    %c0_i32_1 = arith.constant 0 : i32
    return %c0_i32, %c0_i32_0 : i32, i32
  }
  func.func @transform_5(%arg0: i32) -> (i32, i32) {
    %c0_i32 = arith.constant 0 : i32
    %c0_i32_0 = arith.constant 0 : i32
    %c0_i32_1 = arith.constant 0 : i32
    return %c0_i32, %c0_i32_0 : i32, i32
  }
  func.func @transform_6(%arg0: i32) -> (i32, i32) {
    %c0_i32 = arith.constant 0 : i32
    %c0_i32_0 = arith.constant 0 : i32
    %c0_i32_1 = arith.constant 0 : i32
    return %c0_i32, %c0_i32_0 : i32, i32
  }
  func.func @transform_7(%arg0: i32) -> (i32, i32) {
    %c0_i32 = arith.constant 0 : i32
    %c0_i32_0 = arith.constant 0 : i32
    %c0_i32_1 = arith.constant 0 : i32
    return %c0_i32, %c0_i32_0 : i32, i32
  }
  func.func @transform_8(%arg0: i32) -> i32 {
    %c0_i32 = arith.constant 0 : i32
    %c0_i32_0 = arith.constant 0 : i32
    return %c0_i32 : i32
  }
  func.func @transform_9(%arg0: i32) -> (i32, i32) {
    %c0_i32 = arith.constant 0 : i32
    %c0_i32_0 = arith.constant 0 : i32
    return %c0_i32, %arg0 : i32, i32
  }
}

</mosaic_0001>

<llo_original>
// kernel: tpu_custom_call.1
$region0: #{tpu_custom_call.1}
  #allocation0 [shape = 'u32[]', space=smem, size = 0x4, offset = 0x4, fixed_abs, tag = 'smem constant byte address 0x4 - core index']
  #allocation1 [shape = 'u32[144,128]{1,0:T(1,128)}', space=vmem, size = 0x12000, scoped, tag = 'internal scratch']
  #allocation2 [shape = 'f32[1]{0:T(128)S(6)}', space=smem, size = 0x200, scoped, tag = 'scoped memory for tpu_custom_call.1']
  %s0 = inlined_call_operand.vmem [shape: f32[6,512], index: 0, kind: input, shape index: {}]
  %s1 = inlined_call_operand.vmem [shape: f32[2,512], index: 1, kind: input, shape index: {}]
  %s2 = inlined_call_operand.vmem [shape: f32[32,6], index: 2, kind: input, shape index: {}]
  %s3 = inlined_call_operand.vmem [shape: f32[32,2], index: 3, kind: input, shape index: {}]
  %s4 = inlined_call_operand.vmem [shape: f32[32,1], index: 4, kind: input, shape index: {}]
  %s5 = inlined_call_operand.vmem [shape: f32[32,32], index: 5, kind: input, shape index: {}]
  %s6 = inlined_call_operand.vmem [shape: f32[32,1], index: 6, kind: input, shape index: {}]
  %s7 = inlined_call_operand.vmem [shape: f32[32,1], index: 7, kind: input, shape index: {}]
  %s8 = inlined_call_operand.<no memory space> [shape: f32[1], index: 8, kind: input, shape index: {}]
  %s9 = inlined_call_operand.hbm [shape: f32[1,512], index: 9, kind: output, shape index: {}]
  %s10 = sld [smem:[#allocation0]]
  $region69: #{tpu_custom_call.1} parent=0
    _
  %s12 = ssub.s32 1, %s10
  %s13 = scalar_select 0, %s12, %s10
  %14 = sst [smem:[#allocation2]] %s8
  $region1: #{tpu_custom_call.1} parent=0
    #allocation3 [shape = 'u8[1024]{0}', space=vmem, size = 0x400, scoped, tag = 'output window, operand 0']
    #allocation4 [shape = 's32[2]{0}', space=sflag, size = 0x8, scoped, tag = 'scoped memory for tpu_custom_call.1']
    %15 = vsyncpa [#allocation4], 0
    %s16 = scalar_lea.sflag [#allocation4], 1
    %17 = vsyncpa %s16, 0
    loop: start=0, step=1, limit=6
    $region2: #{tpu_custom_call.1} parent=1 // loop_pre_header
      _
    $region3: #{tpu_custom_call.1} parent=1 // loop_header
      %s19 = sphi 0, %s23
      %p20 = scmp.ge.s32.totalorder %s19, 6
      %s29 = sphi 0, %s31
      %s32 = sphi 0, %s29
      %s33 = sphi 0, %s32
      %s49 = sphi 0, %s33
      %s55 = sphi 0, %s57
      %s58 = sphi 0, %s55
      %s59 = sphi 0, %s58
      %s75 = sphi 0, %s59
      %s79 = sphi 0, %s79
      %s81 = sphi 0, %s79
      %s82 = sphi 0, %s81
      %s96 = sphi 0, %s82
      %s100 = sphi 0, %s100
      %s102 = sphi 0, %s100
      %s103 = sphi 0, %s102
      %s117 = sphi 0, %s103
      %s121 = sphi 0, %s121
      %s123 = sphi 0, %s121
      %s124 = sphi 0, %s123
      %s138 = sphi 0, %s124
      %s142 = sphi 0, %s142
      %s144 = sphi 0, %s142
      %s145 = sphi 0, %s144
      %s159 = sphi 0, %s145
      %s163 = sphi 0, %s163
      %s165 = sphi 0, %s163
      %s166 = sphi 0, %s165
      %s180 = sphi 0, %s166
      %s184 = sphi 0, %s184
      %s186 = sphi 0, %s184
      %s187 = sphi 0, %s186
      %s201 = sphi 0, %s187
      %s205 = sphi 0, %s205
      %s207 = sphi 0, %s205
      %s208 = sphi 0, %s207
      %s222 = sphi 0, %s208
      %s228 = sphi 0, %s230
      %s231 = sphi 0, %s228
      %s232 = sphi 0, %s231
      %s248 = sphi 0, %s232
    $region4: #{tpu_custom_call.1} parent=1 // loop_header_branch
      %22 = sbr.rel (%p20) target = $region8
    $region5: #{tpu_custom_call.1} parent=1 // loop_body
      %s24 = ssub.s32 %s19, 1
      %s25 = ssub.s32 %s19, 2
      %s26 = sadd.s32 %s19, 1
      %s27 = ssub.s32 %s19, %s26
      %p28 = scmp.eq.s32.totalorder %s27, 0
      %s30 = sadd.s32 %s29, 1
      %s31 = scalar_select %p28, %s29, %s30
      %p34 = pneg %p28
      %p35 = scmp.eq.s32.totalorder %s19, 3
      %p36 = por %p34, %p35
      %p37 = scmp.ne.s32.totalorder %s29, %s32
      %p38 = scmp.eq.s32.totalorder %s19, 0
      %p39 = por %p37, %p38
      %p40 = scmp.ne.s32.totalorder %s29, %s32
      %p41 = scmp.eq.s32.totalorder %s24, 3
      %p42 = por %p40, %p41
      %p43 = scmp.ne.s32.totalorder %s32, %s33
      %p44 = scmp.eq.s32.totalorder %s24, 0
      %p45 = por %p43, %p44
      %p46 = scmp.ne.s32.totalorder %s32, %s33
      %p47 = scmp.eq.s32.totalorder %s25, 3
      %p48 = por %p46, %p47
      %p50 = scmp.ne.s32.totalorder %s33, %s49
      %p51 = scmp.eq.s32.totalorder %s25, 0
      %p52 = por %p50, %p51
      %s53 = ssub.s32 %s19, %s26
      %p54 = scmp.eq.s32.totalorder %s53, 0
      %s56 = sadd.s32 %s55, 1
      %s57 = scalar_select %p54, %s55, %s56
      %p60 = pneg %p54
      %p61 = scmp.eq.s32.totalorder %s19, 3
      %p62 = por %p60, %p61
      %p63 = scmp.ne.s32.totalorder %s55, %s58
      %p64 = scmp.eq.s32.totalorder %s19, 0
      %p65 = por %p63, %p64
      %p66 = scmp.ne.s32.totalorder %s55, %s58
      %p67 = scmp.eq.s32.totalorder %s24, 3
      %p68 = por %p66, %p67
      %p69 = scmp.ne.s32.totalorder %s58, %s59
      %p70 = scmp.eq.s32.totalorder %s24, 0
      %p71 = por %p69, %p70
      %p72 = scmp.ne.s32.totalorder %s58, %s59
      %p73 = scmp.eq.s32.totalorder %s25, 3
      %p74 = por %p72, %p73
      %p76 = scmp.ne.s32.totalorder %s59, %s75
      %p77 = scmp.eq.s32.totalorder %s25, 0
      %p78 = por %p76, %p77
      %s80 = sadd.s32 %s79, 1
      %p83 = scmp.eq.s32.totalorder %s19, 3
      %p84 = scmp.ne.s32.totalorder %s79, %s81
      %p85 = scmp.eq.s32.totalorder %s19, 0
      %p86 = por %p84, %p85
      %p87 = scmp.ne.s32.totalorder %s79, %s81
      %p88 = scmp.eq.s32.totalorder %s24, 3
      %p89 = por %p87, %p88
      %p90 = scmp.ne.s32.totalorder %s81, %s82
      %p91 = scmp.eq.s32.totalorder %s24, 0
      %p92 = por %p90, %p91
      %p93 = scmp.ne.s32.totalorder %s81, %s82
      %p94 = scmp.eq.s32.totalorder %s25, 3
      %p95 = por %p93, %p94
      %p97 = scmp.ne.s32.totalorder %s82, %s96
      %p98 = scmp.eq.s32.totalorder %s25, 0
      %p99 = por %p97, %p98
      %s101 = sadd.s32 %s100, 1
      %p104 = scmp.eq.s32.totalorder %s19, 3
      %p105 = scmp.ne.s32.totalorder %s100, %s102
      %p106 = scmp.eq.s32.totalorder %s19, 0
      %p107 = por %p105, %p106
      %p108 = scmp.ne.s32.totalorder %s100, %s102
      %p109 = scmp.eq.s32.totalorder %s24, 3
      %p110 = por %p108, %p109
      %p111 = scmp.ne.s32.totalorder %s102, %s103
      %p112 = scmp.eq.s32.totalorder %s24, 0
      %p113 = por %p111, %p112
      %p114 = scmp.ne.s32.totalorder %s102, %s103
      %p115 = scmp.eq.s32.totalorder %s25, 3
      %p116 = por %p114, %p115
      %p118 = scmp.ne.s32.totalorder %s103, %s117
      %p119 = scmp.eq.s32.totalorder %s25, 0
      %p120 = por %p118, %p119
      %s122 = sadd.s32 %s121, 1
      %p125 = scmp.eq.s32.totalorder %s19, 3
      %p126 = scmp.ne.s32.totalorder %s121, %s123
      %p127 = scmp.eq.s32.totalorder %s19, 0
      %p128 = por %p126, %p127
      %p129 = scmp.ne.s32.totalorder %s121, %s123
      %p130 = scmp.eq.s32.totalorder %s24, 3
      %p131 = por %p129, %p130
      %p132 = scmp.ne.s32.totalorder %s123, %s124
      %p133 = scmp.eq.s32.totalorder %s24, 0
      %p134 = por %p132, %p133
      %p135 = scmp.ne.s32.totalorder %s123, %s124
      %p136 = scmp.eq.s32.totalorder %s25, 3
      %p137 = por %p135, %p136
      %p139 = scmp.ne.s32.totalorder %s124, %s138
      %p140 = scmp.eq.s32.totalorder %s25, 0
      %p141 = por %p139, %p140
      %s143 = sadd.s32 %s142, 1
      %p146 = scmp.eq.s32.totalorder %s19, 3
      %p147 = scmp.ne.s32.totalorder %s142, %s144
      %p148 = scmp.eq.s32.totalorder %s19, 0
      %p149 = por %p147, %p148
      %p150 = scmp.ne.s32.totalorder %s142, %s144
      %p151 = scmp.eq.s32.totalorder %s24, 3
      %p152 = por %p150, %p151
      %p153 = scmp.ne.s32.totalorder %s144, %s145
      %p154 = scmp.eq.s32.totalorder %s24, 0
      %p155 = por %p153, %p154
      %p156 = scmp.ne.s32.totalorder %s144, %s145
      %p157 = scmp.eq.s32.totalorder %s25, 3
      %p158 = por %p156, %p157
      %p160 = scmp.ne.s32.totalorder %s145, %s159
      %p161 = scmp.eq.s32.totalorder %s25, 0
      %p162 = por %p160, %p161
      %s164 = sadd.s32 %s163, 1
      %p167 = scmp.eq.s32.totalorder %s19, 3
      %p168 = scmp.ne.s32.totalorder %s163, %s165
      %p169 = scmp.eq.s32.totalorder %s19, 0
      %p170 = por %p168, %p169
      %p171 = scmp.ne.s32.totalorder %s163, %s165
      %p172 = scmp.eq.s32.totalorder %s24, 3
      %p173 = por %p171, %p172
      %p174 = scmp.ne.s32.totalorder %s165, %s166
      %p175 = scmp.eq.s32.totalorder %s24, 0
      %p176 = por %p174, %p175
      %p177 = scmp.ne.s32.totalorder %s165, %s166
      %p178 = scmp.eq.s32.totalorder %s25, 3
      %p179 = por %p177, %p178
      %p181 = scmp.ne.s32.totalorder %s166, %s180
      %p182 = scmp.eq.s32.totalorder %s25, 0
      %p183 = por %p181, %p182
      %s185 = sadd.s32 %s184, 1
      %p188 = scmp.eq.s32.totalorder %s19, 3
      %p189 = scmp.ne.s32.totalorder %s184, %s186
      %p190 = scmp.eq.s32.totalorder %s19, 0
      %p191 = por %p189, %p190
      %p192 = scmp.ne.s32.totalorder %s184, %s186
      %p193 = scmp.eq.s32.totalorder %s24, 3
      %p194 = por %p192, %p193
      %p195 = scmp.ne.s32.totalorder %s186, %s187
      %p196 = scmp.eq.s32.totalorder %s24, 0
      %p197 = por %p195, %p196
      %p198 = scmp.ne.s32.totalorder %s186, %s187
      %p199 = scmp.eq.s32.totalorder %s25, 3
      %p200 = por %p198, %p199
      %p202 = scmp.ne.s32.totalorder %s187, %s201
      %p203 = scmp.eq.s32.totalorder %s25, 0
      %p204 = por %p202, %p203
      %s206 = sadd.s32 %s205, 1
      %p209 = scmp.eq.s32.totalorder %s19, 3
      %p210 = scmp.ne.s32.totalorder %s205, %s207
      %p211 = scmp.eq.s32.totalorder %s19, 0
      %p212 = por %p210, %p211
      %p213 = scmp.ne.s32.totalorder %s205, %s207
      %p214 = scmp.eq.s32.totalorder %s24, 3
      %p215 = por %p213, %p214
      %p216 = scmp.ne.s32.totalorder %s207, %s208
      %p217 = scmp.eq.s32.totalorder %s24, 0
      %p218 = por %p216, %p217
      %p219 = scmp.ne.s32.totalorder %s207, %s208
      %p220 = scmp.eq.s32.totalorder %s25, 3
      %p221 = por %p219, %p220
      %p223 = scmp.ne.s32.totalorder %s208, %s222
      %p224 = scmp.eq.s32.totalorder %s25, 0
      %p225 = por %p223, %p224
      %s226 = ssub.s32 %s19, %s26
      %p227 = scmp.eq.s32.totalorder %s226, 0
      %s229 = sadd.s32 %s228, 1
      %s230 = scalar_select %p227, %s228, %s229
      %p233 = pneg %p227
      %p234 = scmp.eq.s32.totalorder %s19, 3
      %p235 = por %p233, %p234
      %p236 = scmp.ne.s32.totalorder %s228, %s231
      %p237 = scmp.eq.s32.totalorder %s19, 0
      %p238 = por %p236, %p237
      %p239 = scmp.ne.s32.totalorder %s228, %s231
      %p240 = scmp.eq.s32.totalorder %s24, 3
      %p241 = por %p239, %p240
      %p242 = scmp.ne.s32.totalorder %s231, %s232
      %p243 = scmp.eq.s32.totalorder %s24, 0
      %p244 = por %p242, %p243
      %p245 = scmp.ne.s32.totalorder %s231, %s232
      %p246 = scmp.eq.s32.totalorder %s25, 3
      %p247 = por %p245, %p246
      %p249 = scmp.ne.s32.totalorder %s232, %s248
      %p250 = scmp.eq.s32.totalorder %s25, 0
      %p251 = por %p249, %p250
      %p252 = scmp.le.s32.totalorder 1, %s19
      %p253 = scmp.lt.s32.totalorder %s19, 5
      %p254 = pnand %p252, %p253
      %p255 = pneg %p254
      // Predicated region
      $region9: #{tpu_custom_call.1} parent=5 // pred_check
        _
      $region10: #{tpu_custom_call.1} parent=5 // pred_check_branch
        %257 = sbr.rel (%p254) target = $region12
      $region11: #{tpu_custom_call.1} parent=5 // pred_region
        %s258 = ssub.s32 %s19, 1
        // Predicated region
        $region13: #{tpu_custom_call.1} parent=11 // pred_check
          %p259 = pneg %p92
        $region14: #{tpu_custom_call.1} parent=11 // pred_check_branch
          %261 = sbr.rel (%p259) target = $region16
        $region15: #{tpu_custom_call.1} parent=11 // pred_region
          _
        $region16: #{tpu_custom_call.1} parent=11 // pred_fallthru
          _
        // Predicated region
        $region17: #{tpu_custom_call.1} parent=11 // pred_check
          %p262 = pneg %p113
        $region18: #{tpu_custom_call.1} parent=11 // pred_check_branch
          %264 = sbr.rel (%p262) target = $region20
        $region19: #{tpu_custom_call.1} parent=11 // pred_region
          _
        $region20: #{tpu_custom_call.1} parent=11 // pred_fallthru
          _
        // Predicated region
        $region21: #{tpu_custom_call.1} parent=11 // pred_check
          %p265 = pneg %p134
        $region22: #{tpu_custom_call.1} parent=11 // pred_check_branch
          %267 = sbr.rel (%p265) target = $region24
        $region23: #{tpu_custom_call.1} parent=11 // pred_region
          _
        $region24: #{tpu_custom_call.1} parent=11 // pred_fallthru
          _
        // Predicated region
        $region25: #{tpu_custom_call.1} parent=11 // pred_check
          %p268 = pneg %p155
        $region26: #{tpu_custom_call.1} parent=11 // pred_check_branch
          %270 = sbr.rel (%p268) target = $region28
        $region27: #{tpu_custom_call.1} parent=11 // pred_region
          _
        $region28: #{tpu_custom_call.1} parent=11 // pred_fallthru
          _
        // Predicated region
        $region29: #{tpu_custom_call.1} parent=11 // pred_check
          %p271 = pneg %p176
        $region30: #{tpu_custom_call.1} parent=11 // pred_check_branch
          %273 = sbr.rel (%p271) target = $region32
        $region31: #{tpu_custom_call.1} parent=11 // pred_region
          _
        $region32: #{tpu_custom_call.1} parent=11 // pred_fallthru
          _
        // Predicated region
        $region33: #{tpu_custom_call.1} parent=11 // pred_check
          %p274 = pneg %p197
        $region34: #{tpu_custom_call.1} parent=11 // pred_check_branch
          %276 = sbr.rel (%p274) target = $region36
        $region35: #{tpu_custom_call.1} parent=11 // pred_region
          _
        $region36: #{tpu_custom_call.1} parent=11 // pred_fallthru
          _
        // Predicated region
        $region37: #{tpu_custom_call.1} parent=11 // pred_check
          %p277 = pneg %p218
        $region38: #{tpu_custom_call.1} parent=11 // pred_check_branch
          %279 = sbr.rel (%p277) target = $region40
        $region39: #{tpu_custom_call.1} parent=11 // pred_region
          _
        $region40: #{tpu_custom_call.1} parent=11 // pred_fallthru
          _
      $region12: #{tpu_custom_call.1} parent=5 // pred_fallthru
        _
      %p280 = scmp.lt.s32.totalorder %s19, 4
      // Predicated region
      $region41: #{tpu_custom_call.1} parent=5 // pred_check
        %p281 = pneg %p280
      $region42: #{tpu_custom_call.1} parent=5 // pred_check_branch
        %283 = sbr.rel (%p281) target = $region44
      $region43: #{tpu_custom_call.1} parent=5 // pred_region
        // Predicated region
        $region45: #{tpu_custom_call.1} parent=43 // pred_check
          %p284 = pneg %p39
        $region46: #{tpu_custom_call.1} parent=43 // pred_check_branch
          %286 = sbr.rel (%p284) target = $region48
        $region47: #{tpu_custom_call.1} parent=43 // pred_region
          %p287 = scmp.lt.s32.totalorder %s19, 3
          %s288 = scalar_select %p287, %s19, 3
          %s289 = smul.addr %s288, 8
          %s290 = scalar_lea.vmem %s0, %s289
        $region48: #{tpu_custom_call.1} parent=43 // pred_fallthru
          _
        // Predicated region
        $region49: #{tpu_custom_call.1} parent=43 // pred_check
          %p291 = pneg %p65
        $region50: #{tpu_custom_call.1} parent=43 // pred_check_branch
          %293 = sbr.rel (%p291) target = $region52
        $region51: #{tpu_custom_call.1} parent=43 // pred_region
          %p294 = scmp.lt.s32.totalorder %s19, 3
          %s295 = scalar_select %p294, %s19, 3
          %s296 = smul.addr %s295, 2
          %s297 = scalar_lea.vmem %s1, %s296
        $region52: #{tpu_custom_call.1} parent=43 // pred_fallthru
          _
      $region44: #{tpu_custom_call.1} parent=5 // pred_fallthru
        _
      %p298 = scmp.le.s32.totalorder 1, %s19
      %p299 = scmp.lt.s32.totalorder %s19, 5
      %p300 = pnand %p298, %p299
      %p301 = pneg %p300
      // Predicated region
      $region53: #{tpu_custom_call.1} parent=5 // pred_check
        _
      $region54: #{tpu_custom_call.1} parent=5 // pred_check_branch
        %303 = sbr.rel (%p300) target = $region56
      $region55: #{tpu_custom_call.1} parent=5 // pred_region
        %s304 = ssub.s32 %s19, 1
        %p305 = scmp.lt.s32.totalorder %s24, 3
        %s306 = scalar_select %p305, %s24, 3
        %s307 = smul.addr %s306, 8
        %s308 = scalar_lea.vmem %s0, %s307
        %p309 = pneg %p45
        %p310 = pneg %p42
        %p311 = scmp.lt.s32.totalorder %s24, 3
        %s312 = scalar_select %p311, %s24, 3
        %s313 = smul.addr %s312, 2
        %s314 = scalar_lea.vmem %s1, %s313
        %p315 = pneg %p71
        %p316 = pneg %p68
        %p317 = pneg %p92
        %p318 = pneg %p89
        %p319 = pneg %p113
        %p320 = pneg %p110
        %p321 = pneg %p134
        %p322 = pneg %p131
        %p323 = pneg %p155
        %p324 = pneg %p152
        %p325 = pneg %p176
        %p326 = pneg %p173
        %p327 = pneg %p197
        %p328 = pneg %p194
        %p329 = pneg %p218
        %p330 = pneg %p215
        %p331 = pneg %p244
        %p332 = pneg %p241
        %s333 = sand.u32 %s231, 1
        %s334 = scalar_lea.sflag [#allocation4], %s333
        %s335 = sand.u32 %s231, 1
        %s336 = scalar_lea.vmem [#allocation3], %s335
        %p337 = scmp.lt.s32.totalorder %s24, 3
        %s338 = scalar_select %p337, %s24, 3
        %s339 = smul.addr %s338, 8
        %s340 = scalar_lea.vmem %s0, %s339
        %p341 = scmp.lt.s32.totalorder %s24, 3
        %s342 = scalar_select %p341, %s24, 3
        %s343 = smul.addr %s342, 2
        %s344 = scalar_lea.vmem %s1, %s343
        %v345 = vld [vmem:[%s2] sm:$0xff]
        %v346 = vld [vmem:[%s2 + $0x8] sm:$0xff]
        %v347 = vld [vmem:[%s2 + $0x10] sm:$0xff]
        %v348 = vld [vmem:[%s2 + $0x18] sm:$0xff]
        %v349 = vld [vmem:[%s340] sm:$0x3f]
        %v350 = vld [vmem:[%s3] sm:$0xff]
        %v351 = vld [vmem:[%s3 + $0x8] sm:$0xff]
        %v352 = vld [vmem:[%s3 + $0x10] sm:$0xff]
        %v353 = vld [vmem:[%s3 + $0x18] sm:$0xff]
        %v354 = vld [vmem:[%s344] sm:$0x3]
        %vm355 = vcmask 15360
        %v357 = vsel %vm355, %v350, 0
        %v360 = vsel %vm355, %v351, 0
        %v363 = vsel %vm355, %v352, 0
        %v366 = vsel %vm355, %v353, 0
        %vm368 = vcmask 1041408
        %v370 = vsel %vm368, %v354, 0
        %372 = vmatprep.subr.mxu0 0.0
        %373 = vmatpush1.msra.mxu0 0.0
        %374 = vmatprep.subr.mxu0 0.0
        %375 = vmatpush1.msra.mxu0 0.0
        %376 = vmatprep.subr.mxu0 0.0
        %377 = vmatpush1.msra.mxu0 0.0
        %378 = vmatprep.subr.mxu0 0.0
        %379 = vmatpush1.msra.mxu0 0.0
        %380 = vmatprep.subr.mxu0 0.0
        %381 = vmatpush1.msra.mxu0 0.0
        %382 = vmatprep.subr.mxu0 0.0
        %383 = vmatpush1.msra.mxu0 0.0
        %384 = vmatprep.subr.mxu0 0.0
        %385 = vmatpush1.msra.mxu0 0.0
        %386 = vmatprep.subr.mxu0 0.0
        %387 = vmatpush1.msra.mxu0 0.0
        %388 = vmatprep.subr.mxu0 0.0
        %389 = vmatpush1.msra.mxu0 0.0
        %390 = vmatprep.subr.mxu0 0.0
        %391 = vmatpush1.msra.mxu0 0.0
        %392 = vmatprep.subr.mxu0 0.0
        %393 = vmatpush1.msra.mxu0 0.0
        %394 = vmatprep.subr.mxu0 0.0
        %395 = vmatpush1.msra.mxu0 0.0
        %396 = vmatprep.subr.mxu0 0.0
        %397 = vmatpush1.msra.mxu0 0.0
        %398 = vmatprep.subr.mxu0 0.0
        %399 = vmatpush1.msra.mxu0 0.0
        %400 = vmatprep.subr.mxu0 0.0
        %401 = vmatpush1.msra.mxu0 0.0
        %402 = vmatprep.subr.mxu0 0.0
        %403 = vmatpush1.msra.mxu0 %v370
        %404 = vmatprep.subr.mxu0 0.0
        %405 = vmatpush2.msra.mxu0 0.0
        %406 = vmatprep.subr.mxu0 0.0
        %407 = vmatpush2.msra.mxu0 0.0
        %408 = vmatprep.subr.mxu0 0.0
        %409 = vmatpush2.msra.mxu0 0.0
        %410 = vmatprep.subr.mxu0 0.0
        %411 = vmatpush2.msra.mxu0 0.0
        %412 = vmatprep.subr.mxu0 0.0
        %413 = vmatpush2.msra.mxu0 0.0
        %414 = vmatprep.subr.mxu0 0.0
        %415 = vmatpush2.msra.mxu0 0.0
        %416 = vmatprep.subr.mxu0 0.0
        %417 = vmatpush2.msra.mxu0 0.0
        %418 = vmatprep.subr.mxu0 0.0
        %419 = vmatpush2.msra.mxu0 0.0
        %420 = vmatprep.subr.mxu0 0.0
        %421 = vmatpush2.msra.mxu0 0.0
        %422 = vmatprep.subr.mxu0 0.0
        %423 = vmatpush2.msra.mxu0 0.0
        %424 = vmatprep.subr.mxu0 0.0
        %425 = vmatpush2.msra.mxu0 0.0
        %426 = vmatprep.subr.mxu0 0.0
        %427 = vmatpush2.msra.mxu0 0.0
        %428 = vmatprep.subr.mxu0 0.0
        %429 = vmatpush2.msra.mxu0 0.0
        %430 = vmatprep.subr.mxu0 0.0
        %431 = vmatpush2.msra.mxu0 0.0
        %432 = vmatprep.subr.mxu0 0.0
        %433 = vmatpush2.msra.mxu0 0.0
        %434 = vmatprep.subr.mxu0 0.0
        %435 = vmatpush2.msra.mxu0 0.0
        %436 = vmatprep.mubr.f32.mxu0 0.0
        %437 = vmatmul.mubr.f32.gmra.mxu0 %v357
        %v438 = vpop.f32.mrf.mxu0
        %v439 = vadd.f32 0.0, %v438
        %v440 = vpop.f32.mrf.mxu0
        %441 = vmatprep.mubr.f32.mxu0 0.0
        %442 = vmatmul.mubr.f32.gmra.mxu0 %v360
        %v443 = vpop.f32.mrf.mxu0
        %v444 = vadd.f32 0.0, %v443
        %v445 = vpop.f32.mrf.mxu0
        %446 = vmatprep.mubr.f32.mxu0 0.0
        %447 = vmatmul.mubr.f32.gmra.mxu0 %v363
        %v448 = vpop.f32.mrf.mxu0
        %v449 = vadd.f32 0.0, %v448
        %v450 = vpop.f32.mrf.mxu0
        %451 = vmatprep.mubr.f32.mxu0 0.0
        %452 = vmatmul.mubr.f32.gmra.mxu0 %v366
        %v453 = vpop.f32.mrf.mxu0
        %v454 = vadd.f32 0.0, %v453
        %v455 = vpop.f32.mrf.mxu0
        %456 = vdwg.mxu0
        %vm457 = vcmask 48128
        %v459 = vsel %vm457, %v345, 0
        %v462 = vsel %vm457, %v346, 0
        %v465 = vsel %vm457, %v347, 0
        %v468 = vsel %vm457, %v348, 0
        %vm470 = vcmask 1045504
        %v472 = vsel %vm470, %v349, 0
        %474 = vmatprep.subr.mxu0 0.0
        %475 = vmatpush1.msra.mxu0 0.0
        %476 = vmatprep.subr.mxu0 0.0
        %477 = vmatpush1.msra.mxu0 0.0
        %478 = vmatprep.subr.mxu0 0.0
        %479 = vmatpush1.msra.mxu0 0.0
        %480 = vmatprep.subr.mxu0 0.0
        %481 = vmatpush1.msra.mxu0 0.0
        %482 = vmatprep.subr.mxu0 0.0
        %483 = vmatpush1.msra.mxu0 0.0
        %484 = vmatprep.subr.mxu0 0.0
        %485 = vmatpush1.msra.mxu0 0.0
        %486 = vmatprep.subr.mxu0 0.0
        %487 = vmatpush1.msra.mxu0 0.0
        %488 = vmatprep.subr.mxu0 0.0
        %489 = vmatpush1.msra.mxu0 0.0
        %490 = vmatprep.subr.mxu0 0.0
        %491 = vmatpush1.msra.mxu0 0.0
        %492 = vmatprep.subr.mxu0 0.0
        %493 = vmatpush1.msra.mxu0 0.0
        %494 = vmatprep.subr.mxu0 0.0
        %495 = vmatpush1.msra.mxu0 0.0
        %496 = vmatprep.subr.mxu0 0.0
        %497 = vmatpush1.msra.mxu0 0.0
        %498 = vmatprep.subr.mxu0 0.0
        %499 = vmatpush1.msra.mxu0 0.0
        %500 = vmatprep.subr.mxu0 0.0
        %501 = vmatpush1.msra.mxu0 0.0
        %502 = vmatprep.subr.mxu0 0.0
        %503 = vmatpush1.msra.mxu0 0.0
        %504 = vmatprep.subr.mxu0 0.0
        %505 = vmatpush1.msra.mxu0 %v472
        %506 = vmatprep.subr.mxu0 0.0
        %507 = vmatpush2.msra.mxu0 0.0
        %508 = vmatprep.subr.mxu0 0.0
        %509 = vmatpush2.msra.mxu0 0.0
        %510 = vmatprep.subr.mxu0 0.0
        %511 = vmatpush2.msra.mxu0 0.0
        %512 = vmatprep.subr.mxu0 0.0
        %513 = vmatpush2.msra.mxu0 0.0
        %514 = vmatprep.subr.mxu0 0.0
        %515 = vmatpush2.msra.mxu0 0.0
        %516 = vmatprep.subr.mxu0 0.0
        %517 = vmatpush2.msra.mxu0 0.0
        %518 = vmatprep.subr.mxu0 0.0
        %519 = vmatpush2.msra.mxu0 0.0
        %520 = vmatprep.subr.mxu0 0.0
        %521 = vmatpush2.msra.mxu0 0.0
        %522 = vmatprep.subr.mxu0 0.0
        %523 = vmatpush2.msra.mxu0 0.0
        %524 = vmatprep.subr.mxu0 0.0
        %525 = vmatpush2.msra.mxu0 0.0
        %526 = vmatprep.subr.mxu0 0.0
        %527 = vmatpush2.msra.mxu0 0.0
        %528 = vmatprep.subr.mxu0 0.0
        %529 = vmatpush2.msra.mxu0 0.0
        %530 = vmatprep.subr.mxu0 0.0
        %531 = vmatpush2.msra.mxu0 0.0
        %532 = vmatprep.subr.mxu0 0.0
        %533 = vmatpush2.msra.mxu0 0.0
        %534 = vmatprep.subr.mxu0 0.0
        %535 = vmatpush2.msra.mxu0 0.0
        %536 = vmatprep.subr.mxu0 0.0
        %537 = vmatpush2.msra.mxu0 0.0
        %538 = vmatprep.mubr.f32.mxu0 0.0
        %539 = vmatmul.mubr.f32.gmra.mxu0 %v459
        %v540 = vpop.f32.mrf.mxu0
        %v541 = vadd.f32 %v439, %v540
        %v542 = vpop.f32.mrf.mxu0
        %543 = vmatprep.mubr.f32.mxu0 0.0
        %544 = vmatmul.mubr.f32.gmra.mxu0 %v462
        %v545 = vpop.f32.mrf.mxu0
        %v546 = vadd.f32 %v444, %v545
        %v547 = vpop.f32.mrf.mxu0
        %548 = vmatprep.mubr.f32.mxu0 0.0
        %549 = vmatmul.mubr.f32.gmra.mxu0 %v465
        %v550 = vpop.f32.mrf.mxu0
        %v551 = vadd.f32 %v449, %v550
        %v552 = vpop.f32.mrf.mxu0
        %553 = vmatprep.mubr.f32.mxu0 0.0
        %554 = vmatmul.mubr.f32.gmra.mxu0 %v468
        %v555 = vpop.f32.mrf.mxu0
        %v556 = vadd.f32 %v454, %v555
        %v557 = vpop.f32.mrf.mxu0
        %558 = vdwg.mxu0
        %v559 = vld [vmem:[%s4] sm:$0xff]
        %v560 = vld [vmem:[%s4 + $0x8] sm:$0xff]
        %v561 = vld [vmem:[%s4 + $0x10] sm:$0xff]
        %v562 = vld [vmem:[%s4 + $0x18] sm:$0xff]
        %564 = vset.pattern.permute.xlu0 0
        %565 = vperm.xlu0 %564, %v559
        %v566 = vpop.permute.xlu0 %565
        %569 = vset.pattern.permute.xlu0 0
        %570 = vperm.xlu0 %569, %v560
        %v571 = vpop.permute.xlu0 %570
        %574 = vset.pattern.permute.xlu0 0
        %575 = vperm.xlu0 %574, %v561
        %v576 = vpop.permute.xlu0 %575
        %579 = vset.pattern.permute.xlu0 0
        %580 = vperm.xlu0 %579, %v562
        %v581 = vpop.permute.xlu0 %580
        %v583 = vadd.f32 %v541, %v566
        %v584 = vadd.f32 %v546, %v571
        %v585 = vadd.f32 %v551, %v576
        %v586 = vadd.f32 %v556, %v581
        %v587 = vmax.f32 %v583, 0.0
        %v588 = vmax.f32 %v584, 0.0
        %v589 = vmax.f32 %v585, 0.0
        %v590 = vmax.f32 %v586, 0.0
        %v591 = vld [vmem:[%s5] sm:$0xff]
        %v592 = vld [vmem:[%s5 + $0x8] sm:$0xff]
        %v593 = vld [vmem:[%s5 + $0x10] sm:$0xff]
        %v594 = vld [vmem:[%s5 + $0x18] sm:$0xff]
        %v595 = vld [vmem:[%s6] sm:$0xff]
        %v596 = vld [vmem:[%s6 + $0x8] sm:$0xff]
        %v597 = vld [vmem:[%s6 + $0x10] sm:$0xff]
        %v598 = vld [vmem:[%s6 + $0x18] sm:$0xff]
        %600 = vset.pattern.permute.xlu0 0
        %601 = vperm.xlu0 %600, %v595
        %v602 = vpop.permute.xlu0 %601
        %605 = vset.pattern.permute.xlu0 0
        %606 = vperm.xlu0 %605, %v596
        %v607 = vpop.permute.xlu0 %606
        %610 = vset.pattern.permute.xlu0 0
        %611 = vperm.xlu0 %610, %v597
        %v612 = vpop.permute.xlu0 %611
        %615 = vset.pattern.permute.xlu0 0
        %616 = vperm.xlu0 %615, %v598
        %v617 = vpop.permute.xlu0 %616
        %vm619 = vcmask 261120
        %v621 = vsel %vm619, %v591, 0
        %v624 = vsel %vm619, %v592, 0
        %v627 = vsel %vm619, %v593, 0
        %v630 = vsel %vm619, %v594, 0
        %632 = vmatprep.subr.mxu0 0.0
        %633 = vmatpush1.msra.mxu0 0.0
        %634 = vmatprep.subr.mxu0 0.0
        %635 = vmatpush1.msra.mxu0 0.0
        %636 = vmatprep.subr.mxu0 0.0
        %637 = vmatpush1.msra.mxu0 0.0
        %638 = vmatprep.subr.mxu0 0.0
        %639 = vmatpush1.msra.mxu0 0.0
        %640 = vmatprep.subr.mxu0 0.0
        %641 = vmatpush1.msra.mxu0 0.0
        %642 = vmatprep.subr.mxu0 0.0
        %643 = vmatpush1.msra.mxu0 0.0
        %644 = vmatprep.subr.mxu0 0.0
        %645 = vmatpush1.msra.mxu0 0.0
        %646 = vmatprep.subr.mxu0 0.0
        %647 = vmatpush1.msra.mxu0 0.0
        %648 = vmatprep.subr.mxu0 0.0
        %649 = vmatpush1.msra.mxu0 0.0
        %650 = vmatprep.subr.mxu0 0.0
        %651 = vmatpush1.msra.mxu0 0.0
        %652 = vmatprep.subr.mxu0 0.0
        %653 = vmatpush1.msra.mxu0 0.0
        %654 = vmatprep.subr.mxu0 0.0
        %655 = vmatpush1.msra.mxu0 0.0
        %656 = vmatprep.subr.mxu0 0.0
        %657 = vmatpush1.msra.mxu0 %v590
        %658 = vmatprep.subr.mxu0 0.0
        %659 = vmatpush1.msra.mxu0 %v589
        %660 = vmatprep.subr.mxu0 0.0
        %661 = vmatpush1.msra.mxu0 %v588
        %662 = vmatprep.subr.mxu0 0.0
        %663 = vmatpush1.msra.mxu0 %v587
        %664 = vmatprep.subr.mxu0 0.0
        %665 = vmatpush2.msra.mxu0 0.0
        %666 = vmatprep.subr.mxu0 0.0
        %667 = vmatpush2.msra.mxu0 0.0
        %668 = vmatprep.subr.mxu0 0.0
        %669 = vmatpush2.msra.mxu0 0.0
        %670 = vmatprep.subr.mxu0 0.0
        %671 = vmatpush2.msra.mxu0 0.0
        %672 = vmatprep.subr.mxu0 0.0
        %673 = vmatpush2.msra.mxu0 0.0
        %674 = vmatprep.subr.mxu0 0.0
        %675 = vmatpush2.msra.mxu0 0.0
        %676 = vmatprep.subr.mxu0 0.0
        %677 = vmatpush2.msra.mxu0 0.0
        %678 = vmatprep.subr.mxu0 0.0
        %679 = vmatpush2.msra.mxu0 0.0
        %680 = vmatprep.subr.mxu0 0.0
        %681 = vmatpush2.msra.mxu0 0.0
        %682 = vmatprep.subr.mxu0 0.0
        %683 = vmatpush2.msra.mxu0 0.0
        %684 = vmatprep.subr.mxu0 0.0
        %685 = vmatpush2.msra.mxu0 0.0
        %686 = vmatprep.subr.mxu0 0.0
        %687 = vmatpush2.msra.mxu0 0.0
        %688 = vmatprep.subr.mxu0 0.0
        %689 = vmatpush2.msra.mxu0 0.0
        %690 = vmatprep.subr.mxu0 0.0
        %691 = vmatpush2.msra.mxu0 0.0
        %692 = vmatprep.subr.mxu0 0.0
        %693 = vmatpush2.msra.mxu0 0.0
        %694 = vmatprep.subr.mxu0 0.0
        %695 = vmatpush2.msra.mxu0 0.0
        %696 = vmatprep.mubr.f32.mxu0 0.0
        %697 = vmatmul.mubr.f32.gmra.mxu0 %v621
        %v698 = vpop.f32.mrf.mxu0
        %v699 = vadd.f32 %v602, %v698
        %v700 = vpop.f32.mrf.mxu0
        %701 = vmatprep.mubr.f32.mxu0 0.0
        %702 = vmatmul.mubr.f32.gmra.mxu0 %v624
        %v703 = vpop.f32.mrf.mxu0
        %v704 = vadd.f32 %v607, %v703
        %v705 = vpop.f32.mrf.mxu0
        %706 = vmatprep.mubr.f32.mxu0 0.0
        %707 = vmatmul.mubr.f32.gmra.mxu0 %v627
        %v708 = vpop.f32.mrf.mxu0
        %v709 = vadd.f32 %v612, %v708
        %v710 = vpop.f32.mrf.mxu0
        %711 = vmatprep.mubr.f32.mxu0 0.0
        %712 = vmatmul.mubr.f32.gmra.mxu0 %v630
        %v713 = vpop.f32.mrf.mxu0
        %v714 = vadd.f32 %v617, %v713
        %v715 = vpop.f32.mrf.mxu0
        %716 = vdwg.mxu0
        %v717 = vmax.f32 %v699, 0.0
        %v718 = vmax.f32 %v704, 0.0
        %v719 = vmax.f32 %v709, 0.0
        %v720 = vmax.f32 %v714, 0.0
        %v721 = vld [vmem:[%s7] sm:$0xff]
        %v722 = vld [vmem:[%s7 + $0x8] sm:$0xff]
        %v723 = vld [vmem:[%s7 + $0x10] sm:$0xff]
        %v724 = vld [vmem:[%s7 + $0x18] sm:$0xff]
        %726 = vset.pattern.permute.xlu0 0
        %727 = vperm.xlu0 %726, %v721
        %v728 = vpop.permute.xlu0 %727
        %731 = vset.pattern.permute.xlu0 0
        %732 = vperm.xlu0 %731, %v722
        %v733 = vpop.permute.xlu0 %732
        %736 = vset.pattern.permute.xlu0 0
        %737 = vperm.xlu0 %736, %v723
        %v738 = vpop.permute.xlu0 %737
        %741 = vset.pattern.permute.xlu0 0
        %742 = vperm.xlu0 %741, %v724
        %v743 = vpop.permute.xlu0 %742
        %v745 = vmul.f32 %v717, %v728
        %v746 = vmul.f32 %v718, %v733
        %v747 = vmul.f32 %v719, %v738
        %v748 = vmul.f32 %v720, %v743
        %v749 = vadd.f32 %v745, %v746
        %v750 = vadd.f32 %v749, %v747
        %v751 = vadd.f32 %v750, %v748
        %v752 = vrot.slane %v751, 4
        %v753 = vadd.f32 %v751, %v752
        %v754 = vrot.slane %v753, 2
        %v755 = vadd.f32 %v753, %v754
        %v756 = vrot.slane %v755, 1
        %v757 = vadd.f32 %v755, %v756
        %s758 = sld [smem:[#allocation2]]
        %v759 = vstv %s758
        %v760 = vadd.f32 %v757, %v759
        %761 = vst [vmem:[%s336] sm:$0x1] %v760
        %s762 = sand.u32 %s231, 1
        %s763 = scalar_lea.sflag [#allocation4], %s762
        %s764 = sand.u32 %s231, 1
        %s765 = scalar_lea.vmem [#allocation3], %s764
        // Predicated region
        $region57: #{tpu_custom_call.1} parent=55 // pred_check
          %p766 = pneg %p241
        $region58: #{tpu_custom_call.1} parent=55 // pred_check_branch
          %768 = sbr.rel (%p766) target = $region60
        $region59: #{tpu_custom_call.1} parent=55 // pred_region
          %s770 = ssub.s32 16, 16
          %771 = vsyncadd %s763, %s770
          %s772 = smul.addr %s24, 16
          %s773 = scalar_lea.hbm %s9, %s772
          %s775 = sshll.u32 %s765, 4
          %s776 = int_to_ptr.vmem [resolvable:$true] %s775
          %778 = dma.vmem_to_hbm [thread:$0]  %s776, 16, %s773, %s763
        $region60: #{tpu_custom_call.1} parent=55 // pred_fallthru
          _
      $region56: #{tpu_custom_call.1} parent=5 // pred_fallthru
        _
      %p779 = scmp.le.s32.totalorder 2, %s19
      // Predicated region
      $region61: #{tpu_custom_call.1} parent=5 // pred_check
        %p780 = pneg %p779
      $region62: #{tpu_custom_call.1} parent=5 // pred_check_branch
        %782 = sbr.rel (%p780) target = $region64
      $region63: #{tpu_custom_call.1} parent=5 // pred_region
        %s783 = ssub.s32 %s19, 2
        // Predicated region
        $region65: #{tpu_custom_call.1} parent=63 // pred_check
          %p784 = pneg %p247
        $region66: #{tpu_custom_call.1} parent=63 // pred_check_branch
          %786 = sbr.rel (%p784) target = $region68
        $region67: #{tpu_custom_call.1} parent=63 // pred_region
          %s787 = sand.u32 %s232, 1
          %s788 = scalar_lea.sflag [#allocation4], %s787
          %s789 = sand.u32 %s232, 1
          %s790 = scalar_lea.vmem [#allocation3], %s789
          %791 = dma.done %s788, 16
        $region68: #{tpu_custom_call.1} parent=63 // pred_fallthru
          _
      $region64: #{tpu_custom_call.1} parent=5 // pred_fallthru
        _
    $region6: #{tpu_custom_call.1} parent=1 // loop_footer
      %s23 = sadd.s32 1, %s19
    $region7: #{tpu_custom_call.1} parent=1 // loop_footer_branch
      %18 = sbr.rel target = $region3
    $region8: #{tpu_custom_call.1} parent=1 // loop_exit
      _
    %792 = vsyncpa [#allocation4], 1
    %s793 = scalar_lea.sflag [#allocation4], 1
    %794 = vsyncpa %s793, 1

</llo_original>
